<compile_context>
chip_gen: v6e
topology: v6e:2x2x1
jax: 0.10.0
libtpu: 0.0.40
codegen_flags: <defaults>
</compile_context>

<pallas_src>
import functools

import jax
import jax.numpy as jnp
from jax import lax
from jax.experimental import pallas as pl
from jax.experimental.pallas import tpu as pltpu

K = 3  # kernel_size


def resblock_kernel(x_ref, w1_ref, b1_ref, w2_ref, b2_ref, out_ref, *, H, W):
    # x_ref  : (N*C, H*W)        batch+channels on sublanes, spatial on lanes
    # w*_ref : (N*C, 9*N*C)      BN-folded, block-diagonal-over-batch conv weights
    # b*_ref : (N*C, 1)          BN-folded bias (broadcasts over lanes)
    # out_ref: (N*C, H*W)        lane/sublane-dense output
    HW = H * W

    x = x_ref[...].astype(jnp.float32)
    w1 = w1_ref[...].astype(jnp.float32)
    w2 = w2_ref[...].astype(jnp.float32)
    b1 = b1_ref[...].astype(jnp.float32)
    b2 = b2_ref[...].astype(jnp.float32)

    # ---- hoisted per-lane geometry + the 9 per-tap border masks (shared by both convs)
    lane = lax.broadcasted_iota(jnp.int32, (1, HW), 1)
    if (W & (W - 1)) == 0:                 # power-of-two W: avoid vector int div
        col = jnp.bitwise_and(lane, W - 1)
    else:
        col = lane % W
    top = lane >= W                        # valid when dh = -1 (row above exists)
    bot = lane < (H - 1) * W               # valid when dh = +1
    left = col >= 1                        # valid when dw = -1
    right = col < (W - 1)                  # valid when dw = +1

    shifts, masks = [], []
    for kh in range(K):
        dh = kh - 1
        for kw in range(K):
            dw = kw - 1
            shifts.append(dh * W + dw)     # flat spatial offset read by this tap
            conds = []
            if dh < 0:
                conds.append(top)
            if dh > 0:
                conds.append(bot)
            if dw < 0:
                conds.append(left)
            if dw > 0:
                conds.append(right)
            masks.append(functools.reduce(jnp.logical_and, conds) if conds else None)

    def im2col(src):
        # (9*NC, HW) im2col operand of a 3x3 / pad=1 / stride=1 conv, built in vregs:
        # 9 lane-rolls (XLU) of the fused slab, border-masked with the hoisted masks.
        taps = []
        for s, m in zip(shifts, masks):
            t = pltpu.roll(src, shift=(-s) % HW, axis=1) if s else src
            if m is not None:
                t = jnp.where(m, t, 0.0)
            taps.append(t)
        return jnp.concatenate(taps, axis=0)

    # ---- conv1 (+folded BN) + ReLU : one (NC, 9NC) x (9NC, HW) MXU matmul ----
    h1 = jnp.dot(w1, im2col(x), preferred_element_type=jnp.float32) + b1
    h1 = jnp.maximum(h1, 0.0)

    # ---- conv2 (+folded BN), identity shortcut, final ReLU ----
    h2 = jnp.dot(w2, im2col(h1), preferred_element_type=jnp.float32) + b2
    out_ref[...] = jnp.maximum(h2 + x, 0.0).astype(out_ref.dtype)


def resblock_pallas(x_nchw, w1_hwio, b1, w2_hwio, b2):
    """x_nchw: (N, C, H, W).  w*_hwio: (3,3,C,C) BN-folded.  b*: (C,).  Returns NCHW."""
    N, C, H, W = x_nchw.shape
    NC, HW = N * C, H * W
    xf = x_nchw.reshape(NC, HW)            # free reshape: NCHW is already (N*C, H*W)-contiguous

    def to_blockdiag(w_hwio):
        # HWIO (kh,kw,ci,co) -> per-image (co, tap, ci), then block-diag over batch:
        # row r = n*C+co, column t*(N*C) + n*C + ci; zero for the other image's block.
        wt = jnp.transpose(w_hwio, (3, 0, 1, 2)).reshape(C, K * K, C)   # (co, t, ci)
        eye = jnp.eye(N, dtype=wt.dtype)
        wbd = jnp.einsum('otc,nm->notmc', wt, eye)                      # (n,co,t,n',ci)
        return wbd.reshape(NC, K * K * NC)

    w1m, w2m = to_blockdiag(w1_hwio), to_blockdiag(w2_hwio)
    b1f = jnp.tile(b1, N).reshape(NC, 1)   # row n*C+co -> b[co]
    b2f = jnp.tile(b2, N).reshape(NC, 1)

    kern = functools.partial(resblock_kernel, H=H, W=W)
    vmem_specs = [pl.BlockSpec(memory_space=pltpu.MemorySpace.VMEM) for _ in range(5)]
    out = pl.pallas_call(
        kern,
        out_shape=jax.ShapeDtypeStruct((NC, HW), x_nchw.dtype),
        in_specs=vmem_specs,
        out_specs=pl.BlockSpec(memory_space=pltpu.MemorySpace.VMEM),
    )(xf, w1m, b1f, w2m, b2f)
    return out.reshape(N, C, H, W)


# ---------- pure-JAX reference (for sanity checking) ----------
def _conv_same_nchw(x, w_hwio, b):
    y = lax.conv_general_dilated(
        x, w_hwio, window_strides=(1, 1), padding="SAME",
        dimension_numbers=("NCHW", "HWIO", "NCHW"))
    return y + b.reshape(1, -1, 1, 1)


def resblock_ref(x, w1, b1, w2, b2):
    h = jax.nn.relu(_conv_same_nchw(x, w1, b1))
    h = _conv_same_nchw(h, w2, b2)
    return jax.nn.relu(h + x)


def make_params(key, c):
    """Deterministic Conv_Block params with inference-mode BN folded in (HWIO)."""
    ks = jax.random.split(key, 10)
    eps = 1e-5

    def fold(kw_, kg, kb, km, kv):
        w = 0.1 * jax.random.normal(kw_, (K, K, c, c), jnp.float32)   # HWIO
        gamma = 1.0 + 0.1 * jax.random.normal(kg, (c,), jnp.float32)
        beta = 0.1 * jax.random.normal(kb, (c,), jnp.float32)
        mean = 0.1 * jax.random.normal(km, (c,), jnp.float32)
        var = jnp.abs(jax.random.normal(kv, (c,), jnp.float32)) + 0.5
        scale = gamma / jnp.sqrt(var + eps)
        w_f = w * scale.reshape(1, 1, 1, c)    # fold BN scale (per out-channel)
        b_f = beta - mean * scale              # folded BN bias, shape (c,)
        return w_f, b_f

    w1, b1 = fold(ks[0], ks[1], ks[2], ks[3], ks[4])
    w2, b2 = fold(ks[5], ks[6], ks[7], ks[8], ks[9])
    return w1, b1, w2, b2


if __name__ == "__main__":
    key = jax.random.PRNGKey(0)
    k_x, k_p = jax.random.split(key)

    N, C, H, W = 2, 4, 16, 16                 # in_channel == channel, stride=1
    x = jax.random.normal(k_x, (N, C, H, W), jnp.float32)
    w1, b1, w2, b2 = make_params(k_p, C)

    out = jax.block_until_ready(resblock_pallas(x, w1, b1, w2, b2))

    ref = resblock_ref(x, w1, b1, w2, b2)
    assert out.shape == (N, C, H, W)
    err = jnp.max(jnp.abs(out - ref))
    assert jnp.allclose(out, ref, atol=1e-3, rtol=1e-3), f"max err {err}"

    print("KERNEL_OK")
</pallas_src>

<mosaic_0001>
module attributes {stable_mosaic.version = 11 : i64} {
  func.func @resblock_kernel(%arg0: memref<8x256xf32, #tpu.memory_space<vmem>>, %arg1: memref<8x72xf32, #tpu.memory_space<vmem>>, %arg2: memref<8x1xf32, #tpu.memory_space<vmem>>, %arg3: memref<8x72xf32, #tpu.memory_space<vmem>>, %arg4: memref<8x1xf32, #tpu.memory_space<vmem>>, %arg5: memref<8x256xf32, #tpu.memory_space<vmem>>) attributes {dimension_semantics = [], scalar_prefetch = 0 : i64, scratch_operands = 0 : i64, tpu.core_type = #tpu.core_type<tc>} {
    %c0 = arith.constant 0 : index
    %c0_0 = arith.constant 0 : index
    %0 = vector.load %arg0[%c0, %c0_0] : memref<8x256xf32, #tpu.memory_space<vmem>>, vector<8x256xf32>
    %c0_1 = arith.constant 0 : index
    %c0_2 = arith.constant 0 : index
    %1 = vector.load %arg1[%c0_1, %c0_2] : memref<8x72xf32, #tpu.memory_space<vmem>>, vector<8x72xf32>
    %c0_3 = arith.constant 0 : index
    %c0_4 = arith.constant 0 : index
    %2 = vector.load %arg3[%c0_3, %c0_4] : memref<8x72xf32, #tpu.memory_space<vmem>>, vector<8x72xf32>
    %c0_5 = arith.constant 0 : index
    %c0_6 = arith.constant 0 : index
    %3 = vector.load %arg2[%c0_5, %c0_6] : memref<8x1xf32, #tpu.memory_space<vmem>>, vector<8x1xf32>
    %c0_7 = arith.constant 0 : index
    %c0_8 = arith.constant 0 : index
    %4 = vector.load %arg4[%c0_7, %c0_8] : memref<8x1xf32, #tpu.memory_space<vmem>>, vector<8x1xf32>
    %5 = tpu.iota {dimensions = array<i32: 1>} : vector<1x256xi32>
    %c15_i32 = arith.constant 15 : i32
    %6 = vector.broadcast %c15_i32 : i32 to vector<1x256xi32>
    %7 = arith.andi %5, %6 : vector<1x256xi32>
    %c16_i32 = arith.constant 16 : i32
    %8 = vector.broadcast %c16_i32 : i32 to vector<1x256xi32>
    %9 = arith.cmpi sge, %5, %8 : vector<1x256xi32>
    %c240_i32 = arith.constant 240 : i32
    %10 = vector.broadcast %c240_i32 : i32 to vector<1x256xi32>
    %11 = arith.cmpi slt, %5, %10 : vector<1x256xi32>
    %c1_i32 = arith.constant 1 : i32
    %12 = vector.broadcast %c1_i32 : i32 to vector<1x256xi32>
    %13 = arith.cmpi sge, %7, %12 : vector<1x256xi32>
    %c15_i32_9 = arith.constant 15 : i32
    %14 = vector.broadcast %c15_i32_9 : i32 to vector<1x256xi32>
    %15 = arith.cmpi slt, %7, %14 : vector<1x256xi32>
    %16 = arith.andi %9, %13 : vector<1x256xi1>
    %17 = arith.andi %9, %15 : vector<1x256xi1>
    %18 = arith.andi %11, %13 : vector<1x256xi1>
    %19 = arith.andi %11, %15 : vector<1x256xi1>
    %c17_i32 = arith.constant 17 : i32
    %20 = tpu.dynamic_rotate %0 by %c17_i32 dim 1 : vector<8x256xf32>, i32 -> vector<8x256xf32>
    %cst = arith.constant 0.000000e+00 : f32
    %21 = vector.shape_cast %16 : vector<1x256xi1> to vector<1x256xi1>
    %22 = vector.broadcast %21 : vector<1x256xi1> to vector<8x256xi1>
    %23 = vector.broadcast %cst : f32 to vector<8x256xf32>
    %24 = arith.select %22, %20, %23 : vector<8x256xi1>, vector<8x256xf32>
    %c16_i32_10 = arith.constant 16 : i32
    %25 = tpu.dynamic_rotate %0 by %c16_i32_10 dim 1 : vector<8x256xf32>, i32 -> vector<8x256xf32>
    %cst_11 = arith.constant 0.000000e+00 : f32
    %26 = vector.shape_cast %9 : vector<1x256xi1> to vector<1x256xi1>
    %27 = vector.broadcast %26 : vector<1x256xi1> to vector<8x256xi1>
    %28 = vector.broadcast %cst_11 : f32 to vector<8x256xf32>
    %29 = arith.select %27, %25, %28 : vector<8x256xi1>, vector<8x256xf32>
    %c15_i32_12 = arith.constant 15 : i32
    %30 = tpu.dynamic_rotate %0 by %c15_i32_12 dim 1 : vector<8x256xf32>, i32 -> vector<8x256xf32>
    %cst_13 = arith.constant 0.000000e+00 : f32
    %31 = vector.shape_cast %17 : vector<1x256xi1> to vector<1x256xi1>
    %32 = vector.broadcast %31 : vector<1x256xi1> to vector<8x256xi1>
    %33 = vector.broadcast %cst_13 : f32 to vector<8x256xf32>
    %34 = arith.select %32, %30, %33 : vector<8x256xi1>, vector<8x256xf32>
    %c1_i32_14 = arith.constant 1 : i32
    %35 = tpu.dynamic_rotate %0 by %c1_i32_14 dim 1 : vector<8x256xf32>, i32 -> vector<8x256xf32>
    %cst_15 = arith.constant 0.000000e+00 : f32
    %36 = vector.shape_cast %13 : vector<1x256xi1> to vector<1x256xi1>
    %37 = vector.broadcast %36 : vector<1x256xi1> to vector<8x256xi1>
    %38 = vector.broadcast %cst_15 : f32 to vector<8x256xf32>
    %39 = arith.select %37, %35, %38 : vector<8x256xi1>, vector<8x256xf32>
    %c255_i32 = arith.constant 255 : i32
    %40 = tpu.dynamic_rotate %0 by %c255_i32 dim 1 : vector<8x256xf32>, i32 -> vector<8x256xf32>
    %cst_16 = arith.constant 0.000000e+00 : f32
    %41 = vector.shape_cast %15 : vector<1x256xi1> to vector<1x256xi1>
    %42 = vector.broadcast %41 : vector<1x256xi1> to vector<8x256xi1>
    %43 = vector.broadcast %cst_16 : f32 to vector<8x256xf32>
    %44 = arith.select %42, %40, %43 : vector<8x256xi1>, vector<8x256xf32>
    %c241_i32 = arith.constant 241 : i32
    %45 = tpu.dynamic_rotate %0 by %c241_i32 dim 1 : vector<8x256xf32>, i32 -> vector<8x256xf32>
    %cst_17 = arith.constant 0.000000e+00 : f32
    %46 = vector.shape_cast %18 : vector<1x256xi1> to vector<1x256xi1>
    %47 = vector.broadcast %46 : vector<1x256xi1> to vector<8x256xi1>
    %48 = vector.broadcast %cst_17 : f32 to vector<8x256xf32>
    %49 = arith.select %47, %45, %48 : vector<8x256xi1>, vector<8x256xf32>
    %c240_i32_18 = arith.constant 240 : i32
    %50 = tpu.dynamic_rotate %0 by %c240_i32_18 dim 1 : vector<8x256xf32>, i32 -> vector<8x256xf32>
    %cst_19 = arith.constant 0.000000e+00 : f32
    %51 = vector.shape_cast %11 : vector<1x256xi1> to vector<1x256xi1>
    %52 = vector.broadcast %51 : vector<1x256xi1> to vector<8x256xi1>
    %53 = vector.broadcast %cst_19 : f32 to vector<8x256xf32>
    %54 = arith.select %52, %50, %53 : vector<8x256xi1>, vector<8x256xf32>
    %c239_i32 = arith.constant 239 : i32
    %55 = tpu.dynamic_rotate %0 by %c239_i32 dim 1 : vector<8x256xf32>, i32 -> vector<8x256xf32>
    %cst_20 = arith.constant 0.000000e+00 : f32
    %56 = vector.shape_cast %19 : vector<1x256xi1> to vector<1x256xi1>
    %57 = vector.broadcast %56 : vector<1x256xi1> to vector<8x256xi1>
    %58 = vector.broadcast %cst_20 : f32 to vector<8x256xf32>
    %59 = arith.select %57, %55, %58 : vector<8x256xi1>, vector<8x256xf32>
    %60 = tpu.concatenate %24, %29, %34, %39, %0, %44, %49, %54, %59 in 0 : vector<8x256xf32>, vector<8x256xf32>, vector<8x256xf32>, vector<8x256xf32>, vector<8x256xf32>, vector<8x256xf32>, vector<8x256xf32>, vector<8x256xf32>, vector<8x256xf32> -> vector<72x256xf32>
    %cst_21 = arith.constant dense<0.000000e+00> : vector<8x256xf32>
    %61 = tpu.matmul %1, %60, %cst_21 {dimension_numbers = #tpu.dot_dimension_numbers<[1], [0], [0], [1], [0, 0, 1, 1], [], []>} : vector<8x72xf32>, vector<72x256xf32>, vector<8x256xf32> -> vector<8x256xf32>
    %62 = vector.broadcast %3 : vector<8x1xf32> to vector<8x256xf32>
    %63 = arith.addf %61, %62 : vector<8x256xf32>
    %cst_22 = arith.constant 0.000000e+00 : f32
    %64 = vector.broadcast %cst_22 : f32 to vector<8x256xf32>
    %65 = arith.maximumf %63, %64 : vector<8x256xf32>
    %c17_i32_23 = arith.constant 17 : i32
    %66 = tpu.dynamic_rotate %65 by %c17_i32_23 dim 1 : vector<8x256xf32>, i32 -> vector<8x256xf32>
    %cst_24 = arith.constant 0.000000e+00 : f32
    %67 = vector.shape_cast %16 : vector<1x256xi1> to vector<1x256xi1>
    %68 = vector.broadcast %67 : vector<1x256xi1> to vector<8x256xi1>
    %69 = vector.broadcast %cst_24 : f32 to vector<8x256xf32>
    %70 = arith.select %68, %66, %69 : vector<8x256xi1>, vector<8x256xf32>
    %c16_i32_25 = arith.constant 16 : i32
    %71 = tpu.dynamic_rotate %65 by %c16_i32_25 dim 1 : vector<8x256xf32>, i32 -> vector<8x256xf32>
    %cst_26 = arith.constant 0.000000e+00 : f32
    %72 = vector.shape_cast %9 : vector<1x256xi1> to vector<1x256xi1>
    %73 = vector.broadcast %72 : vector<1x256xi1> to vector<8x256xi1>
    %74 = vector.broadcast %cst_26 : f32 to vector<8x256xf32>
    %75 = arith.select %73, %71, %74 : vector<8x256xi1>, vector<8x256xf32>
    %c15_i32_27 = arith.constant 15 : i32
    %76 = tpu.dynamic_rotate %65 by %c15_i32_27 dim 1 : vector<8x256xf32>, i32 -> vector<8x256xf32>
    %cst_28 = arith.constant 0.000000e+00 : f32
    %77 = vector.shape_cast %17 : vector<1x256xi1> to vector<1x256xi1>
    %78 = vector.broadcast %77 : vector<1x256xi1> to vector<8x256xi1>
    %79 = vector.broadcast %cst_28 : f32 to vector<8x256xf32>
    %80 = arith.select %78, %76, %79 : vector<8x256xi1>, vector<8x256xf32>
    %c1_i32_29 = arith.constant 1 : i32
    %81 = tpu.dynamic_rotate %65 by %c1_i32_29 dim 1 : vector<8x256xf32>, i32 -> vector<8x256xf32>
    %cst_30 = arith.constant 0.000000e+00 : f32
    %82 = vector.shape_cast %13 : vector<1x256xi1> to vector<1x256xi1>
    %83 = vector.broadcast %82 : vector<1x256xi1> to vector<8x256xi1>
    %84 = vector.broadcast %cst_30 : f32 to vector<8x256xf32>
    %85 = arith.select %83, %81, %84 : vector<8x256xi1>, vector<8x256xf32>
    %c255_i32_31 = arith.constant 255 : i32
    %86 = tpu.dynamic_rotate %65 by %c255_i32_31 dim 1 : vector<8x256xf32>, i32 -> vector<8x256xf32>
    %cst_32 = arith.constant 0.000000e+00 : f32
    %87 = vector.shape_cast %15 : vector<1x256xi1> to vector<1x256xi1>
    %88 = vector.broadcast %87 : vector<1x256xi1> to vector<8x256xi1>
    %89 = vector.broadcast %cst_32 : f32 to vector<8x256xf32>
    %90 = arith.select %88, %86, %89 : vector<8x256xi1>, vector<8x256xf32>
    %c241_i32_33 = arith.constant 241 : i32
    %91 = tpu.dynamic_rotate %65 by %c241_i32_33 dim 1 : vector<8x256xf32>, i32 -> vector<8x256xf32>
    %cst_34 = arith.constant 0.000000e+00 : f32
    %92 = vector.shape_cast %18 : vector<1x256xi1> to vector<1x256xi1>
    %93 = vector.broadcast %92 : vector<1x256xi1> to vector<8x256xi1>
    %94 = vector.broadcast %cst_34 : f32 to vector<8x256xf32>
    %95 = arith.select %93, %91, %94 : vector<8x256xi1>, vector<8x256xf32>
    %c240_i32_35 = arith.constant 240 : i32
    %96 = tpu.dynamic_rotate %65 by %c240_i32_35 dim 1 : vector<8x256xf32>, i32 -> vector<8x256xf32>
    %cst_36 = arith.constant 0.000000e+00 : f32
    %97 = vector.shape_cast %11 : vector<1x256xi1> to vector<1x256xi1>
    %98 = vector.broadcast %97 : vector<1x256xi1> to vector<8x256xi1>
    %99 = vector.broadcast %cst_36 : f32 to vector<8x256xf32>
    %100 = arith.select %98, %96, %99 : vector<8x256xi1>, vector<8x256xf32>
    %c239_i32_37 = arith.constant 239 : i32
    %101 = tpu.dynamic_rotate %65 by %c239_i32_37 dim 1 : vector<8x256xf32>, i32 -> vector<8x256xf32>
    %cst_38 = arith.constant 0.000000e+00 : f32
    %102 = vector.shape_cast %19 : vector<1x256xi1> to vector<1x256xi1>
    %103 = vector.broadcast %102 : vector<1x256xi1> to vector<8x256xi1>
    %104 = vector.broadcast %cst_38 : f32 to vector<8x256xf32>
    %105 = arith.select %103, %101, %104 : vector<8x256xi1>, vector<8x256xf32>
    %106 = tpu.concatenate %70, %75, %80, %85, %65, %90, %95, %100, %105 in 0 : vector<8x256xf32>, vector<8x256xf32>, vector<8x256xf32>, vector<8x256xf32>, vector<8x256xf32>, vector<8x256xf32>, vector<8x256xf32>, vector<8x256xf32>, vector<8x256xf32> -> vector<72x256xf32>
    %cst_39 = arith.constant dense<0.000000e+00> : vector<8x256xf32>
    %107 = tpu.matmul %2, %106, %cst_39 {dimension_numbers = #tpu.dot_dimension_numbers<[1], [0], [0], [1], [0, 0, 1, 1], [], []>} : vector<8x72xf32>, vector<72x256xf32>, vector<8x256xf32> -> vector<8x256xf32>
    %108 = vector.broadcast %4 : vector<8x1xf32> to vector<8x256xf32>
    %109 = arith.addf %107, %108 : vector<8x256xf32>
    %110 = arith.addf %109, %0 : vector<8x256xf32>
    %cst_40 = arith.constant 0.000000e+00 : f32
    %111 = vector.broadcast %cst_40 : f32 to vector<8x256xf32>
    %112 = arith.maximumf %110, %111 : vector<8x256xf32>
    %c0_41 = arith.constant 0 : index
    %c0_42 = arith.constant 0 : index
    %113 = vector.load %arg5[%c0_41, %c0_42] : memref<8x256xf32, #tpu.memory_space<vmem>>, vector<8x256xf32>
    tpu.vector_store %arg5[%c0_41, %c0_42], %112 {strides = array<i32>} : memref<8x256xf32, #tpu.memory_space<vmem>>, vector<8x256xf32>,
    return
  }
}

</mosaic_0001>

<llo_original>
// kernel: tpu_custom_call.1
$region0: #{tpu_custom_call.1}
  #allocation0 [shape = 'u32[]', space=smem, size = 0x4, offset = 0x4, fixed_abs, tag = 'smem constant byte address 0x4 - core index']
  #allocation1 [shape = 'u32[144,128]{1,0:T(1,128)}', space=vmem, size = 0x12000, scoped, tag = 'internal scratch']
  %s0 = inlined_call_operand.vmem [shape: f32[8,256], index: 0, kind: input, shape index: {}]
  %s1 = inlined_call_operand.hbm [shape: f32[8,72], index: 1, kind: input, shape index: {}]
  %s2 = inlined_call_operand.vmem [shape: f32[8,1], index: 2, kind: input, shape index: {}]
  %s3 = inlined_call_operand.hbm [shape: f32[8,72], index: 3, kind: input, shape index: {}]
  %s4 = inlined_call_operand.vmem [shape: f32[8,1], index: 4, kind: input, shape index: {}]
  %s5 = inlined_call_operand.hbm [shape: f32[8,256], index: 5, kind: output, shape index: {}]
  %s6 = sld [smem:[#allocation0]]
  $region38: #{tpu_custom_call.1} parent=0
    _
  %s8 = ssub.s32 1, %s6
  %s9 = scalar_select 0, %s8, %s6
  $region1: #{tpu_custom_call.1} parent=0
    #allocation2 [shape = 'u8[4096]{0}', space=vmem, size = 0x1000, scoped, tag = 'input window, operand 1, single buffered']
    #allocation3 [shape = 's32[1]{0}', space=sflag, size = 0x4, scoped, tag = 'scoped memory for tpu_custom_call.1']
    #allocation4 [shape = 's32[1]{0}', space=sflag, size = 0x4, scoped, tag = 'scoped memory for tpu_custom_call.1']
    #allocation5 [shape = 'u8[4096]{0}', space=vmem, size = 0x1000, scoped, tag = 'input window, operand 3, single buffered']
    #allocation6 [shape = 's32[1]{0}', space=sflag, size = 0x4, scoped, tag = 'scoped memory for tpu_custom_call.1']
    #allocation7 [shape = 'u8[8192]{0}', space=vmem, size = 0x2000, scoped, tag = 'output window, operand 0, single buffered']
    %10 = vsyncpa [#allocation3], 0
    %11 = vsyncpa [#allocation6], 0
    %12 = vsyncpa [#allocation4], 0
    // Predicated region
    $region2: #{tpu_custom_call.1} parent=1 // pred_check
      _
    $region3: #{tpu_custom_call.1} parent=1 // pred_check_branch
      %14 = sbr.rel (0) target = $region5
    $region4: #{tpu_custom_call.1} parent=1 // pred_region
      _
    $region5: #{tpu_custom_call.1} parent=1 // pred_fallthru
      _
    // Predicated region
    $region6: #{tpu_custom_call.1} parent=1 // pred_check
      _
    $region7: #{tpu_custom_call.1} parent=1 // pred_check_branch
      %16 = sbr.rel (0) target = $region9
    $region8: #{tpu_custom_call.1} parent=1 // pred_region
      %s18 = ssub.s32 128, 128
      %19 = vsyncadd [#allocation3], %s18
      %s21 = sshll.u32 [#allocation2], 4
      %s22 = int_to_ptr.vmem [resolvable:$true] %s21
      %24 = dma.hbm_to_vmem [thread:$0]  %s1, 128, %s22, [#allocation3]
    $region9: #{tpu_custom_call.1} parent=1 // pred_fallthru
      _
    // Predicated region
    $region10: #{tpu_custom_call.1} parent=1 // pred_check
      _
    $region11: #{tpu_custom_call.1} parent=1 // pred_check_branch
      %26 = sbr.rel (0) target = $region13
    $region12: #{tpu_custom_call.1} parent=1 // pred_region
      _
    $region13: #{tpu_custom_call.1} parent=1 // pred_fallthru
      _
    // Predicated region
    $region14: #{tpu_custom_call.1} parent=1 // pred_check
      _
    $region15: #{tpu_custom_call.1} parent=1 // pred_check_branch
      %28 = sbr.rel (0) target = $region17
    $region16: #{tpu_custom_call.1} parent=1 // pred_region
      %s30 = ssub.s32 128, 128
      %31 = vsyncadd [#allocation6], %s30
      %s33 = sshll.u32 [#allocation5], 4
      %s34 = int_to_ptr.vmem [resolvable:$true] %s33
      %36 = dma.hbm_to_vmem [thread:$0]  %s3, 128, %s34, [#allocation6]
    $region17: #{tpu_custom_call.1} parent=1 // pred_fallthru
      _
    // Predicated region
    $region18: #{tpu_custom_call.1} parent=1 // pred_check
      _
    $region19: #{tpu_custom_call.1} parent=1 // pred_check_branch
      %38 = sbr.rel (0) target = $region21
    $region20: #{tpu_custom_call.1} parent=1 // pred_region
      _
    $region21: #{tpu_custom_call.1} parent=1 // pred_fallthru
      _
    // Predicated region
    $region22: #{tpu_custom_call.1} parent=1 // pred_check
      _
    $region23: #{tpu_custom_call.1} parent=1 // pred_check_branch
      %40 = sbr.rel (0) target = $region25
    $region24: #{tpu_custom_call.1} parent=1 // pred_region
      %41 = dma.done [#allocation3], 128
    $region25: #{tpu_custom_call.1} parent=1 // pred_fallthru
      _
    // Predicated region
    $region26: #{tpu_custom_call.1} parent=1 // pred_check
      _
    $region27: #{tpu_custom_call.1} parent=1 // pred_check_branch
      %43 = sbr.rel (0) target = $region29
    $region28: #{tpu_custom_call.1} parent=1 // pred_region
      %44 = dma.done [#allocation6], 128
    $region29: #{tpu_custom_call.1} parent=1 // pred_fallthru
      _
    %v45 = vld [vmem:[%s0] sm:$0xff]
    %v46 = vld [vmem:[%s0 + $0x8] sm:$0xff]
    %v47 = vld [vmem:[#allocation2] sm:$0xff]
    %v48 = vld [vmem:[#allocation5] sm:$0xff]
    %v49 = vld [vmem:[%s2] sm:$0xff]
    %v50 = vld [vmem:[%s4] sm:$0xff]
    %v51 = vlaneseq
    %v52 = vand.u32 %v51, 127
    %v53 = vadd.s32 %v52, 128
    %v54 = vand.u32 %v52, 15
    %v55 = vand.u32 %v53, 15
    %vm56 = vcmp.ge.s32.totalorder %v52, 16
    %vm57 = vcmp.ge.s32.totalorder %v53, 16
    %vm58 = vcmp.lt.s32.totalorder %v52, 240
    %vm59 = vcmp.lt.s32.totalorder %v53, 240
    %vm60 = vcmp.ge.s32.totalorder %v54, 1
    %vm61 = vcmp.ge.s32.totalorder %v55, 1
    %vm62 = vcmp.lt.s32.totalorder %v54, 15
    %vm63 = vcmp.lt.s32.totalorder %v55, 15
    %vm64 = vmand %vm56, %vm60
    %vm65 = vmand %vm57, %vm61
    %vm66 = vmand %vm56, %vm62
    %vm67 = vmand %vm57, %vm63
    %vm68 = vmand %vm58, %vm60
    %vm69 = vmand %vm59, %vm61
    %vm70 = vmand %vm58, %vm62
    %vm71 = vmand %vm59, %vm63
    %72 = vrot.lane.b32.xlu0 %v45, 17
    %v73 = vpop.permute.xlu0 %72
    %74 = vrot.lane.b32.xlu0 %v46, 17
    %v75 = vpop.permute.xlu0 %74
    %vm76 = vcmp.lt.s32.totalorder %v52, 17
    %v77 = vsel %vm76, %v73, %v75
    %v78 = vsel %vm76, %v75, %v73
    %v79 = vsel %vm64, 1, 0
    %v80 = vsel %vm65, 1, 0
    %vm81 = vcmp.eq.s32.totalorder %v79, 1
    %vm82 = vcmp.eq.s32.totalorder %v80, 1
    %v83 = vsel %vm81, %v78, 0.0
    %v84 = vsel %vm82, %v77, 0.0
    %85 = vrot.lane.b32.xlu0 %v45, 16
    %v86 = vpop.permute.xlu0 %85
    %87 = vrot.lane.b32.xlu0 %v46, 16
    %v88 = vpop.permute.xlu0 %87
    %vm89 = vcmp.lt.s32.totalorder %v52, 16
    %v90 = vsel %vm89, %v86, %v88
    %v91 = vsel %vm89, %v88, %v86
    %v92 = vsel %vm56, 1, 0
    %v93 = vsel %vm57, 1, 0
    %vm94 = vcmp.eq.s32.totalorder %v92, 1
    %vm95 = vcmp.eq.s32.totalorder %v93, 1
    %v96 = vsel %vm94, %v91, 0.0
    %v97 = vsel %vm95, %v90, 0.0
    %98 = vrot.lane.b32.xlu0 %v45, 15
    %v99 = vpop.permute.xlu0 %98
    %100 = vrot.lane.b32.xlu0 %v46, 15
    %v101 = vpop.permute.xlu0 %100
    %vm102 = vcmp.lt.s32.totalorder %v52, 15
    %v103 = vsel %vm102, %v99, %v101
    %v104 = vsel %vm102, %v101, %v99
    %v105 = vsel %vm66, 1, 0
    %v106 = vsel %vm67, 1, 0
    %vm107 = vcmp.eq.s32.totalorder %v105, 1
    %vm108 = vcmp.eq.s32.totalorder %v106, 1
    %v109 = vsel %vm107, %v104, 0.0
    %v110 = vsel %vm108, %v103, 0.0
    %111 = vrot.lane.b32.xlu0 %v45, 1
    %v112 = vpop.permute.xlu0 %111
    %113 = vrot.lane.b32.xlu0 %v46, 1
    %v114 = vpop.permute.xlu0 %113
    %vm115 = vcmp.lt.s32.totalorder %v52, 1
    %v116 = vsel %vm115, %v112, %v114
    %v117 = vsel %vm115, %v114, %v112
    %v118 = vsel %vm60, 1, 0
    %v119 = vsel %vm61, 1, 0
    %vm120 = vcmp.eq.s32.totalorder %v118, 1
    %vm121 = vcmp.eq.s32.totalorder %v119, 1
    %v122 = vsel %vm120, %v117, 0.0
    %v123 = vsel %vm121, %v116, 0.0
    %124 = vrot.lane.b32.xlu0 %v45, 127
    %v125 = vpop.permute.xlu0 %124
    %126 = vrot.lane.b32.xlu0 %v46, 127
    %v127 = vpop.permute.xlu0 %126
    %vm128 = vcmp.lt.s32.totalorder %v52, 127
    %v129 = vsel %vm128, %v125, %v127
    %v130 = vsel %vm128, %v127, %v125
    %v131 = vsel %vm62, 1, 0
    %v132 = vsel %vm63, 1, 0
    %vm133 = vcmp.eq.s32.totalorder %v131, 1
    %vm134 = vcmp.eq.s32.totalorder %v132, 1
    %v135 = vsel %vm133, %v129, 0.0
    %v136 = vsel %vm134, %v130, 0.0
    %137 = vrot.lane.b32.xlu0 %v45, 113
    %v138 = vpop.permute.xlu0 %137
    %139 = vrot.lane.b32.xlu0 %v46, 113
    %v140 = vpop.permute.xlu0 %139
    %vm141 = vcmp.lt.s32.totalorder %v52, 113
    %v142 = vsel %vm141, %v138, %v140
    %v143 = vsel %vm141, %v140, %v138
    %v144 = vsel %vm68, 1, 0
    %v145 = vsel %vm69, 1, 0
    %vm146 = vcmp.eq.s32.totalorder %v144, 1
    %vm147 = vcmp.eq.s32.totalorder %v145, 1
    %v148 = vsel %vm146, %v142, 0.0
    %v149 = vsel %vm147, %v143, 0.0
    %150 = vrot.lane.b32.xlu0 %v45, 112
    %v151 = vpop.permute.xlu0 %150
    %152 = vrot.lane.b32.xlu0 %v46, 112
    %v153 = vpop.permute.xlu0 %152
    %vm154 = vcmp.lt.s32.totalorder %v52, 112
    %v155 = vsel %vm154, %v151, %v153
    %v156 = vsel %vm154, %v153, %v151
    %v157 = vsel %vm58, 1, 0
    %v158 = vsel %vm59, 1, 0
    %vm159 = vcmp.eq.s32.totalorder %v157, 1
    %vm160 = vcmp.eq.s32.totalorder %v158, 1
    %v161 = vsel %vm159, %v155, 0.0
    %v162 = vsel %vm160, %v156, 0.0
    %163 = vrot.lane.b32.xlu0 %v45, 111
    %v164 = vpop.permute.xlu0 %163
    %165 = vrot.lane.b32.xlu0 %v46, 111
    %v166 = vpop.permute.xlu0 %165
    %vm167 = vcmp.lt.s32.totalorder %v52, 111
    %v168 = vsel %vm167, %v164, %v166
    %v169 = vsel %vm167, %v166, %v164
    %v170 = vsel %vm70, 1, 0
    %v171 = vsel %vm71, 1, 0
    %vm172 = vcmp.eq.s32.totalorder %v170, 1
    %vm173 = vcmp.eq.s32.totalorder %v171, 1
    %v174 = vsel %vm172, %v168, 0.0
    %v175 = vsel %vm173, %v169, 0.0
    %177 = vset.pattern.permute.xlu0 0
    %178 = vperm.xlu0 %177, %v49
    %v179 = vpop.permute.xlu0 %178
    %vm181 = vcmask 588800
    %v183 = vsel %vm181, %v47, 0
    %185 = vmatprep.subr.mxu0 0.0
    %186 = vmatpush1.msra.mxu0 0.0
    %187 = vmatprep.subr.mxu0 0.0
    %188 = vmatpush1.msra.mxu0 0.0
    %189 = vmatprep.subr.mxu0 0.0
    %190 = vmatpush1.msra.mxu0 0.0
    %191 = vmatprep.subr.mxu0 0.0
    %192 = vmatpush1.msra.mxu0 0.0
    %193 = vmatprep.subr.mxu0 0.0
    %194 = vmatpush1.msra.mxu0 0.0
    %195 = vmatprep.subr.mxu0 0.0
    %196 = vmatpush1.msra.mxu0 0.0
    %197 = vmatprep.subr.mxu0 0.0
    %198 = vmatpush1.msra.mxu0 0.0
    %199 = vmatprep.subr.mxu0 %v175
    %200 = vmatpush1.msra.mxu0 %v174
    %201 = vmatprep.subr.mxu0 %v162
    %202 = vmatpush1.msra.mxu0 %v161
    %203 = vmatprep.subr.mxu0 %v149
    %204 = vmatpush1.msra.mxu0 %v148
    %205 = vmatprep.subr.mxu0 %v136
    %206 = vmatpush1.msra.mxu0 %v135
    %207 = vmatprep.subr.mxu0 %v46
    %208 = vmatpush1.msra.mxu0 %v45
    %209 = vmatprep.subr.mxu0 %v123
    %210 = vmatpush1.msra.mxu0 %v122
    %211 = vmatprep.subr.mxu0 %v110
    %212 = vmatpush1.msra.mxu0 %v109
    %213 = vmatprep.subr.mxu0 %v97
    %214 = vmatpush1.msra.mxu0 %v96
    %215 = vmatprep.subr.mxu0 %v84
    %216 = vmatpush1.msra.mxu0 %v83
    %217 = vmatprep.subr.mxu0 0.0
    %218 = vmatpush2.msra.mxu0 0.0
    %219 = vmatprep.subr.mxu0 0.0
    %220 = vmatpush2.msra.mxu0 0.0
    %221 = vmatprep.subr.mxu0 0.0
    %222 = vmatpush2.msra.mxu0 0.0
    %223 = vmatprep.subr.mxu0 0.0
    %224 = vmatpush2.msra.mxu0 0.0
    %225 = vmatprep.subr.mxu0 0.0
    %226 = vmatpush2.msra.mxu0 0.0
    %227 = vmatprep.subr.mxu0 0.0
    %228 = vmatpush2.msra.mxu0 0.0
    %229 = vmatprep.subr.mxu0 0.0
    %230 = vmatpush2.msra.mxu0 0.0
    %231 = vmatprep.subr.mxu0 0.0
    %232 = vmatpush2.msra.mxu0 0.0
    %233 = vmatprep.subr.mxu0 0.0
    %234 = vmatpush2.msra.mxu0 0.0
    %235 = vmatprep.subr.mxu0 0.0
    %236 = vmatpush2.msra.mxu0 0.0
    %237 = vmatprep.subr.mxu0 0.0
    %238 = vmatpush2.msra.mxu0 0.0
    %239 = vmatprep.subr.mxu0 0.0
    %240 = vmatpush2.msra.mxu0 0.0
    %241 = vmatprep.subr.mxu0 0.0
    %242 = vmatpush2.msra.mxu0 0.0
    %243 = vmatprep.subr.mxu0 0.0
    %244 = vmatpush2.msra.mxu0 0.0
    %245 = vmatprep.subr.mxu0 0.0
    %246 = vmatpush2.msra.mxu0 0.0
    %247 = vmatprep.subr.mxu0 0.0
    %248 = vmatpush2.msra.mxu0 0.0
    %249 = vmatprep.mubr.f32.mxu0 0.0
    %250 = vmatmul.mubr.f32.gmra.mxu0 %v183
    %v251 = vpop.f32.mrf.mxu0
    %v252 = vadd.f32 %v179, %v251
    %v253 = vpop.f32.mrf.mxu0
    %v254 = vadd.f32 %v179, %v253
    %255 = vdwg.mxu0
    %v256 = vmax.f32 %v252, 0.0
    %v257 = vmax.f32 %v254, 0.0
    %258 = vrot.lane.b32.xlu0 %v256, 17
    %v259 = vpop.permute.xlu0 %258
    %260 = vrot.lane.b32.xlu0 %v257, 17
    %v261 = vpop.permute.xlu0 %260
    %v262 = vsel %vm76, %v259, %v261
    %v263 = vsel %vm76, %v261, %v259
    %v264 = vsel %vm81, %v263, 0.0
    %v265 = vsel %vm82, %v262, 0.0
    %266 = vrot.lane.b32.xlu0 %v256, 16
    %v267 = vpop.permute.xlu0 %266
    %268 = vrot.lane.b32.xlu0 %v257, 16
    %v269 = vpop.permute.xlu0 %268
    %v270 = vsel %vm89, %v267, %v269
    %v271 = vsel %vm89, %v269, %v267
    %v272 = vsel %vm94, %v271, 0.0
    %v273 = vsel %vm95, %v270, 0.0
    %274 = vrot.lane.b32.xlu0 %v256, 15
    %v275 = vpop.permute.xlu0 %274
    %276 = vrot.lane.b32.xlu0 %v257, 15
    %v277 = vpop.permute.xlu0 %276
    %v278 = vsel %vm102, %v275, %v277
    %v279 = vsel %vm102, %v277, %v275
    %v280 = vsel %vm107, %v279, 0.0
    %v281 = vsel %vm108, %v278, 0.0
    %282 = vrot.lane.b32.xlu0 %v256, 1
    %v283 = vpop.permute.xlu0 %282
    %284 = vrot.lane.b32.xlu0 %v257, 1
    %v285 = vpop.permute.xlu0 %284
    %v286 = vsel %vm115, %v283, %v285
    %v287 = vsel %vm115, %v285, %v283
    %v288 = vsel %vm120, %v287, 0.0
    %v289 = vsel %vm121, %v286, 0.0
    %290 = vrot.lane.b32.xlu0 %v256, 127
    %v291 = vpop.permute.xlu0 %290
    %292 = vrot.lane.b32.xlu0 %v257, 127
    %v293 = vpop.permute.xlu0 %292
    %v294 = vsel %vm128, %v291, %v293
    %v295 = vsel %vm128, %v293, %v291
    %v296 = vsel %vm133, %v294, 0.0
    %v297 = vsel %vm134, %v295, 0.0
    %298 = vrot.lane.b32.xlu0 %v256, 113
    %v299 = vpop.permute.xlu0 %298
    %300 = vrot.lane.b32.xlu0 %v257, 113
    %v301 = vpop.permute.xlu0 %300
    %v302 = vsel %vm141, %v299, %v301
    %v303 = vsel %vm141, %v301, %v299
    %v304 = vsel %vm146, %v302, 0.0
    %v305 = vsel %vm147, %v303, 0.0
    %306 = vrot.lane.b32.xlu0 %v256, 112
    %v307 = vpop.permute.xlu0 %306
    %308 = vrot.lane.b32.xlu0 %v257, 112
    %v309 = vpop.permute.xlu0 %308
    %v310 = vsel %vm154, %v307, %v309
    %v311 = vsel %vm154, %v309, %v307
    %v312 = vsel %vm159, %v310, 0.0
    %v313 = vsel %vm160, %v311, 0.0
    %314 = vrot.lane.b32.xlu0 %v256, 111
    %v315 = vpop.permute.xlu0 %314
    %316 = vrot.lane.b32.xlu0 %v257, 111
    %v317 = vpop.permute.xlu0 %316
    %v318 = vsel %vm167, %v315, %v317
    %v319 = vsel %vm167, %v317, %v315
    %v320 = vsel %vm172, %v318, 0.0
    %v321 = vsel %vm173, %v319, 0.0
    %323 = vset.pattern.permute.xlu0 0
    %324 = vperm.xlu0 %323, %v50
    %v325 = vpop.permute.xlu0 %324
    %v328 = vsel %vm181, %v48, 0
    %330 = vmatprep.subr.mxu0 0.0
    %331 = vmatpush1.msra.mxu0 0.0
    %332 = vmatprep.subr.mxu0 0.0
    %333 = vmatpush1.msra.mxu0 0.0
    %334 = vmatprep.subr.mxu0 0.0
    %335 = vmatpush1.msra.mxu0 0.0
    %336 = vmatprep.subr.mxu0 0.0
    %337 = vmatpush1.msra.mxu0 0.0
    %338 = vmatprep.subr.mxu0 0.0
    %339 = vmatpush1.msra.mxu0 0.0
    %340 = vmatprep.subr.mxu0 0.0
    %341 = vmatpush1.msra.mxu0 0.0
    %342 = vmatprep.subr.mxu0 0.0
    %343 = vmatpush1.msra.mxu0 0.0
    %344 = vmatprep.subr.mxu0 %v321
    %345 = vmatpush1.msra.mxu0 %v320
    %346 = vmatprep.subr.mxu0 %v313
    %347 = vmatpush1.msra.mxu0 %v312
    %348 = vmatprep.subr.mxu0 %v305
    %349 = vmatpush1.msra.mxu0 %v304
    %350 = vmatprep.subr.mxu0 %v297
    %351 = vmatpush1.msra.mxu0 %v296
    %352 = vmatprep.subr.mxu0 %v257
    %353 = vmatpush1.msra.mxu0 %v256
    %354 = vmatprep.subr.mxu0 %v289
    %355 = vmatpush1.msra.mxu0 %v288
    %356 = vmatprep.subr.mxu0 %v281
    %357 = vmatpush1.msra.mxu0 %v280
    %358 = vmatprep.subr.mxu0 %v273
    %359 = vmatpush1.msra.mxu0 %v272
    %360 = vmatprep.subr.mxu0 %v265
    %361 = vmatpush1.msra.mxu0 %v264
    %362 = vmatprep.subr.mxu0 0.0
    %363 = vmatpush2.msra.mxu0 0.0
    %364 = vmatprep.subr.mxu0 0.0
    %365 = vmatpush2.msra.mxu0 0.0
    %366 = vmatprep.subr.mxu0 0.0
    %367 = vmatpush2.msra.mxu0 0.0
    %368 = vmatprep.subr.mxu0 0.0
    %369 = vmatpush2.msra.mxu0 0.0
    %370 = vmatprep.subr.mxu0 0.0
    %371 = vmatpush2.msra.mxu0 0.0
    %372 = vmatprep.subr.mxu0 0.0
    %373 = vmatpush2.msra.mxu0 0.0
    %374 = vmatprep.subr.mxu0 0.0
    %375 = vmatpush2.msra.mxu0 0.0
    %376 = vmatprep.subr.mxu0 0.0
    %377 = vmatpush2.msra.mxu0 0.0
    %378 = vmatprep.subr.mxu0 0.0
    %379 = vmatpush2.msra.mxu0 0.0
    %380 = vmatprep.subr.mxu0 0.0
    %381 = vmatpush2.msra.mxu0 0.0
    %382 = vmatprep.subr.mxu0 0.0
    %383 = vmatpush2.msra.mxu0 0.0
    %384 = vmatprep.subr.mxu0 0.0
    %385 = vmatpush2.msra.mxu0 0.0
    %386 = vmatprep.subr.mxu0 0.0
    %387 = vmatpush2.msra.mxu0 0.0
    %388 = vmatprep.subr.mxu0 0.0
    %389 = vmatpush2.msra.mxu0 0.0
    %390 = vmatprep.subr.mxu0 0.0
    %391 = vmatpush2.msra.mxu0 0.0
    %392 = vmatprep.subr.mxu0 0.0
    %393 = vmatpush2.msra.mxu0 0.0
    %394 = vmatprep.mubr.f32.mxu0 0.0
    %395 = vmatmul.mubr.f32.gmra.mxu0 %v328
    %v396 = vpop.f32.mrf.mxu0
    %v397 = vadd.f32 %v325, %v396
    %v398 = vpop.f32.mrf.mxu0
    %v399 = vadd.f32 %v325, %v398
    %400 = vdwg.mxu0
    %v401 = vadd.f32 %v397, %v45
    %v402 = vadd.f32 %v399, %v46
    %v403 = vmax.f32 %v401, 0.0
    %v404 = vmax.f32 %v402, 0.0
    %405 = vst [vmem:[#allocation7] sm:$0xff] %v403
    %406 = vst [vmem:[#allocation7 + $0x8] sm:$0xff] %v404
    // Predicated region
    $region30: #{tpu_custom_call.1} parent=1 // pred_check
      _
    $region31: #{tpu_custom_call.1} parent=1 // pred_check_branch
      %408 = sbr.rel (0) target = $region33
    $region32: #{tpu_custom_call.1} parent=1 // pred_region
      %s410 = ssub.s32 256, 256
      %411 = vsyncadd [#allocation4], %s410
      %s413 = sshll.u32 [#allocation7], 4
      %s414 = int_to_ptr.vmem [resolvable:$true] %s413
      %416 = dma.vmem_to_hbm [thread:$0]  %s414, 256, %s5, [#allocation4]
    $region33: #{tpu_custom_call.1} parent=1 // pred_fallthru
      _
    // Predicated region
    $region34: #{tpu_custom_call.1} parent=1 // pred_check
      _
    $region35: #{tpu_custom_call.1} parent=1 // pred_check_branch
      %418 = sbr.rel (0) target = $region37
    $region36: #{tpu_custom_call.1} parent=1 // pred_region
      %419 = dma.done [#allocation4], 256
    $region37: #{tpu_custom_call.1} parent=1 // pred_fallthru
      _
    %420 = vsyncpa [#allocation3], 1
    %421 = vsyncpa [#allocation6], 1
    %422 = vsyncpa [#allocation4], 1

</llo_original>
